<compile_context>
chip_gen: v6e
topology: v6e:2x2x1
jax: 0.10.0
libtpu: 0.0.40
codegen_flags: <defaults>
</compile_context>

<pallas_src>
import jax
import jax.numpy as jnp
from jax import lax
from jax.experimental import pallas as pl
from jax.experimental.pallas import tpu as pltpu


def _round_up(v, m):
    return (v + m - 1) // m * m


def _im2col(x, KH=4, KW=4, stride=2, pad=1):
    """[B,C,H,W] -> patches [B*OH*OW, C*KH*KW]; rows (b,oh,ow), cols (c,kh,kw)."""
    # TODO(synk): the stride-2 window gather cannot be expressed by a BlockSpec, so
    # im2col is done in plain-JAX glue (16x patch materialization); a manual
    # strided-DMA conv decomposition inside the kernel would remove that traffic.
    B, C, H, W = x.shape
    OH = (H + 2 * pad - KH) // stride + 1
    OW = (W + 2 * pad - KW) // stride + 1
    xp = jnp.pad(x, ((0, 0), (0, 0), (pad, pad), (pad, pad)))
    cols = []
    for kh in range(KH):
        for kw in range(KW):
            cols.append(xp[:, :, kh:kh + stride * OH:stride, kw:kw + stride * OW:stride])
    pat = jnp.stack(cols, axis=2)                               # [B, C, KH*KW, OH, OW]
    pat = pat.transpose(0, 3, 4, 1, 2).reshape(B * OH * OW, C * KH * KW)
    return pat, OH, OW


def discriminator_forward(x, params, *, block_rows=1024, eps=1e-5):
    B, C, H, W = x.shape
    C2 = 2 * C
    pat, OH, OW = _im2col(x)
    S = OH * OW                      # spatial positions per image
    P = B * S                        # total conv-output rows
    K = C * 16                       # im2col contraction length

    Kp = _round_up(K, 128)           # lane-dense contraction dim
    C2p = _round_up(C2, 128)         # lane-dense channel dim

    # ---- row-tile selection: each tile = `nb` whole images (nb * S rows), so the
    # fused Linear epilogue never needs cross-tile accumulation. ----
    cap = max(1, block_rows // S)
    nb = 1
    for d in range(1, B + 1):
        if B % d == 0 and d <= cap:
            nb = d
    if (nb * S) % 8 != 0:            # keep the (8,128) block rule satisfied
        nb = B                       # full-extent block is always legal
    TP = nb * S
    num_tiles = B // nb

    # ---- operand layout / padding (glue) ----
    pat_p = jnp.pad(pat, ((0, 0), (0, Kp - K))).astype(jnp.bfloat16)
    w_conv = params["conv_w"].reshape(C2, K).T                           # [K, C2]
    w_conv = jnp.pad(w_conv, ((0, Kp - K), (0, C2p - C2))).astype(jnp.bfloat16)
    gamma = jnp.pad(params["bn_g"].reshape(1, C2).astype(jnp.float32),
                    ((0, 0), (0, C2p - C2)))
    beta = jnp.pad(params["bn_b"].reshape(1, C2).astype(jnp.float32),
                   ((0, 0), (0, C2p - C2)))
    # PyTorch flattens NCHW (c, oh, ow); re-permute the Linear weight to (oh*ow, c)
    # to match the kernel's (b, oh, ow) x channel activation layout.
    w_lin = params["lin_w"].reshape(C2, OH, OW).transpose(1, 2, 0).reshape(S, C2)
    w_lin = jnp.pad(w_lin.astype(jnp.float32), ((0, 0), (0, C2p - C2)))
    b_lin = params["lin_b"].reshape(1).astype(jnp.float32)
    # NOTE: conv bias is intentionally unused — the BN batch-mean subtraction
    # cancels it exactly (training-mode BN only).

    cparams = pltpu.CompilerParams(
        dimension_semantics=("parallel",),
        vmem_limit_bytes=32 * 1024 * 1024,
    )

    # ---------- pass 1: conv matmul (bf16 -> f32) + per-tile channel sum / sumsq ----
    # Only the tiny per-tile stat partials go to HBM; the conv activation stays in
    # registers/VMEM and is recomputed in pass 2.
    def conv_stats_kernel(p_ref, w_ref, sum_ref, ssq_ref):
        y = jnp.dot(p_ref[...], w_ref[...], preferred_element_type=jnp.float32)
        # Per-channel (column) reductions ride the MXU (ones-matmul) instead of the
        # XLU; all 8 result rows are identical, row 0 is consumed downstream.
        ones8 = jnp.ones((8, TP), jnp.float32)
        sum_ref[...] = jnp.dot(ones8, y, preferred_element_type=jnp.float32)[None]
        ssq_ref[...] = jnp.dot(ones8, y * y, preferred_element_type=jnp.float32)[None]

    psum, pssq = pl.pallas_call(
        conv_stats_kernel,
        grid=(num_tiles,),
        in_specs=[
            pl.BlockSpec((TP, Kp), lambda i: (i, 0)),
            pl.BlockSpec((Kp, C2p), lambda i: (0, 0)),
        ],
        out_specs=[
            pl.BlockSpec((1, 8, C2p), lambda i: (i, 0, 0)),
            pl.BlockSpec((1, 8, C2p), lambda i: (i, 0, 0)),
        ],
        out_shape=[
            jax.ShapeDtypeStruct((num_tiles, 8, C2p), jnp.float32),
            jax.ShapeDtypeStruct((num_tiles, 8, C2p), jnp.float32),
        ],
        compiler_params=cparams,
    )(pat_p, w_conv)

    # tiny glue: combine per-tile partials into global per-channel sums  [1, C2p]
    col_sum = jnp.sum(psum[:, 0, :], axis=0, keepdims=True)
    col_ssq = jnp.sum(pssq[:, 0, :], axis=0, keepdims=True)

    # ---------- pass 2: conv recompute + BN (folded scale/shift) + ReLU + Linear ----
    inv_n = 1.0 / float(P)

    def conv_bn_relu_linear_kernel(p_ref, w_ref, s_ref, q_ref, g_ref, b_ref,
                                   wl_ref, bl_ref, o_ref):
        # Recompute the conv tile (bit-identical to pass 1) instead of reloading a
        # materialized activation from HBM.
        y = jnp.dot(p_ref[...], w_ref[...], preferred_element_type=jnp.float32)
        mean = s_ref[...] * inv_n                                # (1, C2p)
        var = q_ref[...] * inv_n - mean * mean                   # biased (PyTorch BN)
        scale = g_ref[...] * lax.rsqrt(var + eps)
        shift = b_ref[...] - mean * scale
        a = jnp.maximum(y * scale + shift, 0.0)                  # (TP, C2p)
        # Fused Linear: rows are grouped per image (TP = nb * S); VPU multiply +
        # XLU reductions (no N=1 matmul).
        t = a.reshape(nb, S, C2p) * wl_ref[...][None, :, :]      # (nb, S, C2p)
        per_b = jnp.sum(t, axis=2)                               # (nb, S)
        per_b = jnp.sum(per_b, axis=1, keepdims=True)            # (nb, 1)
        o_ref[...] = (per_b + bl_ref[0])[None, :, :]             # (1, nb, 1)

    out = pl.pallas_call(
        conv_bn_relu_linear_kernel,
        grid=(num_tiles,),
        in_specs=[
            pl.BlockSpec((TP, Kp), lambda i: (i, 0)),
            pl.BlockSpec((Kp, C2p), lambda i: (0, 0)),
            pl.BlockSpec((1, C2p), lambda i: (0, 0)),
            pl.BlockSpec((1, C2p), lambda i: (0, 0)),
            pl.BlockSpec((1, C2p), lambda i: (0, 0)),
            pl.BlockSpec((1, C2p), lambda i: (0, 0)),
            pl.BlockSpec((S, C2p), lambda i: (0, 0)),
            pl.BlockSpec(memory_space=pltpu.MemorySpace.SMEM),   # b_lin scalar
        ],
        out_specs=pl.BlockSpec((1, nb, 1), lambda i: (i, 0, 0)),
        out_shape=jax.ShapeDtypeStruct((num_tiles, nb, 1), jnp.float32),
        compiler_params=cparams,
    )(pat_p, w_conv, col_sum, col_ssq, gamma, beta, w_lin, b_lin)

    return out.reshape(B, 1)


def reference_forward(x, params, conv_dtype=jnp.float32):
    """Pure-JAX reference matching PyTorch semantics (training-mode BN).
    conv_dtype=bfloat16 gives a matmul-precision-matched reference."""
    y = lax.conv_general_dilated(
        x.astype(conv_dtype), params["conv_w"].astype(conv_dtype),
        window_strides=(2, 2), padding=((1, 1), (1, 1)),
        dimension_numbers=("NCHW", "OIHW", "NCHW"),
        preferred_element_type=jnp.float32)
    y = y + params["conv_b"][None, :, None, None]
    mean = jnp.mean(y, axis=(0, 2, 3), keepdims=True)
    var = jnp.mean((y - mean) ** 2, axis=(0, 2, 3), keepdims=True)
    y = (y - mean) / jnp.sqrt(var + 1e-5)
    y = y * params["bn_g"][None, :, None, None] + params["bn_b"][None, :, None, None]
    y = jnp.maximum(y, 0.0)
    f = y.reshape(x.shape[0], -1)                # NCHW flatten
    return f @ params["lin_w"].T + params["lin_b"]


if __name__ == "__main__":
    B, C, H, W = 2, 4, 16, 16
    C2 = 2 * C
    F = 2 * C * H // 2 * W // 2                  # PyTorch Linear in_features expression

    key = jax.random.PRNGKey(0)
    k1, k2, k3, k4, k5, k6, k7 = jax.random.split(key, 7)
    params = {
        "conv_w": jax.random.normal(k1, (C2, C, 4, 4), jnp.float32) * 0.1,
        "conv_b": jax.random.normal(k2, (C2,), jnp.float32) * 0.1,
        "bn_g": 1.0 + 0.1 * jax.random.normal(k6, (C2,), jnp.float32),
        "bn_b": 0.1 * jax.random.normal(k7, (C2,), jnp.float32),
        "lin_w": jax.random.normal(k3, (1, F), jnp.float32) * 0.05,
        "lin_b": jax.random.normal(k4, (1,), jnp.float32) * 0.05,
    }
    x = jax.random.normal(k5, (B, C, H, W), jnp.float32)

    fwd = jax.jit(discriminator_forward, static_argnames=("block_rows",))
    out_big = jax.block_until_ready(fwd(x, params, block_rows=1024))   # single row tile
    out_sml = jax.block_until_ready(fwd(x, params, block_rows=64))     # multi-tile path

    ref_f32 = jax.block_until_ready(reference_forward(x, params))
    ref_bf16 = jax.block_until_ready(
        reference_forward(x, params, conv_dtype=jnp.bfloat16))

    assert out_big.shape == (B, 1), out_big.shape
    # Tight check against a reference using the same bf16 matmul precision.
    assert jnp.allclose(out_big, ref_bf16, atol=5e-3, rtol=5e-3), (out_big, ref_bf16)
    assert jnp.allclose(out_sml, ref_bf16, atol=5e-3, rtol=5e-3), (out_sml, ref_bf16)
    # Loose check against the full-f32 PyTorch-semantics reference.
    assert jnp.allclose(out_big, ref_f32, atol=1e-1, rtol=1e-1), (out_big, ref_f32)
    print("KERNEL_OK")
</pallas_src>

<mosaic_0001>
module attributes {stable_mosaic.version = 11 : i64} {
  func.func @conv_stats_kernel(%arg0: i32, %arg1: memref<128x128xbf16, #tpu.memory_space<vmem>>, %arg2: memref<128x128xbf16, #tpu.memory_space<vmem>>, %arg3: memref<1x8x128xf32, #tpu.memory_space<vmem>>, %arg4: memref<1x8x128xf32, #tpu.memory_space<vmem>>) attributes {dimension_semantics = [#tpu.dimension_semantics<parallel>], iteration_bounds = array<i64: 1>, scalar_prefetch = 0 : i64, scratch_operands = 0 : i64, tpu.core_type = #tpu.core_type<tc>, window_params = [{transform_indices = @transform_0, window_bounds = array<i64: 128, 128>}, {pipeline_mode = #tpu.pipeline_mode<synchronous>, transform_indices = @transform_1, window_bounds = array<i64: 128, 128>}, {transform_indices = @transform_2, window_bounds = array<i64: 1, 8, 128>}, {transform_indices = @transform_3, window_bounds = array<i64: 1, 8, 128>}]} {
    %c0 = arith.constant 0 : index
    %c0_0 = arith.constant 0 : index
    %0 = vector.load %arg1[%c0, %c0_0] : memref<128x128xbf16, #tpu.memory_space<vmem>>, vector<128x128xbf16>
    %c0_1 = arith.constant 0 : index
    %c0_2 = arith.constant 0 : index
    %1 = vector.load %arg2[%c0_1, %c0_2] : memref<128x128xbf16, #tpu.memory_space<vmem>>, vector<128x128xbf16>
    %cst = arith.constant dense<0.000000e+00> : vector<128x128xf32>
    %2 = tpu.matmul %0, %1, %cst {dimension_numbers = #tpu.dot_dimension_numbers<[1], [0], [0], [1], [0, 0, 1, 1], [], []>} : vector<128x128xbf16>, vector<128x128xbf16>, vector<128x128xf32> -> vector<128x128xf32>
    %cst_3 = arith.constant 1.000000e+00 : f32
    %3 = vector.broadcast %cst_3 : f32 to vector<8x128xf32>
    %cst_4 = arith.constant dense<0.000000e+00> : vector<8x128xf32>
    %4 = tpu.matmul %3, %2, %cst_4 {dimension_numbers = #tpu.dot_dimension_numbers<[1], [0], [0], [1], [0, 0, 1, 1], [], []>} : vector<8x128xf32>, vector<128x128xf32>, vector<8x128xf32> -> vector<8x128xf32>
    %5 = vector.shape_cast %4 : vector<8x128xf32> to vector<1x8x128xf32>
    %c0_5 = arith.constant 0 : index
    %c0_6 = arith.constant 0 : index
    %c0_7 = arith.constant 0 : index
    %6 = vector.load %arg3[%c0_5, %c0_6, %c0_7] : memref<1x8x128xf32, #tpu.memory_space<vmem>>, vector<1x8x128xf32>
    tpu.vector_store %arg3[%c0_5, %c0_6, %c0_7], %5 {strides = array<i32>} : memref<1x8x128xf32, #tpu.memory_space<vmem>>, vector<1x8x128xf32>,
    %7 = arith.mulf %2, %2 : vector<128x128xf32>
    %cst_8 = arith.constant dense<0.000000e+00> : vector<8x128xf32>
    %8 = tpu.matmul %3, %7, %cst_8 {dimension_numbers = #tpu.dot_dimension_numbers<[1], [0], [0], [1], [0, 0, 1, 1], [], []>} : vector<8x128xf32>, vector<128x128xf32>, vector<8x128xf32> -> vector<8x128xf32>
    %9 = vector.shape_cast %8 : vector<8x128xf32> to vector<1x8x128xf32>
    %c0_9 = arith.constant 0 : index
    %c0_10 = arith.constant 0 : index
    %c0_11 = arith.constant 0 : index
    %10 = vector.load %arg4[%c0_9, %c0_10, %c0_11] : memref<1x8x128xf32, #tpu.memory_space<vmem>>, vector<1x8x128xf32>
    tpu.vector_store %arg4[%c0_9, %c0_10, %c0_11], %9 {strides = array<i32>} : memref<1x8x128xf32, #tpu.memory_space<vmem>>, vector<1x8x128xf32>,
    return
  }
  func.func @transform_0(%arg0: i32) -> (i32, i32) {
    %c0_i32 = arith.constant 0 : i32
    %c0_i32_0 = arith.constant 0 : i32
    return %arg0, %c0_i32 : i32, i32
  }
  func.func @transform_1(%arg0: i32) -> (i32, i32) {
    %c0_i32 = arith.constant 0 : i32
    %c0_i32_0 = arith.constant 0 : i32
    %c0_i32_1 = arith.constant 0 : i32
    return %c0_i32, %c0_i32_0 : i32, i32
  }
  func.func @transform_2(%arg0: i32) -> (i32, i32, i32) {
    %c0_i32 = arith.constant 0 : i32
    %c0_i32_0 = arith.constant 0 : i32
    %c0_i32_1 = arith.constant 0 : i32
    return %arg0, %c0_i32, %c0_i32_0 : i32, i32, i32
  }
  func.func @transform_3(%arg0: i32) -> (i32, i32, i32) {
    %c0_i32 = arith.constant 0 : i32
    %c0_i32_0 = arith.constant 0 : i32
    %c0_i32_1 = arith.constant 0 : i32
    return %arg0, %c0_i32, %c0_i32_0 : i32, i32, i32
  }
}

module attributes {stable_mosaic.version = 11 : i64} {
  func.func @conv_bn_relu_linear_kernel(%arg0: i32, %arg1: memref<128x128xbf16, #tpu.memory_space<vmem>>, %arg2: memref<128x128xbf16, #tpu.memory_space<vmem>>, %arg3: memref<1x128xf32, #tpu.memory_space<vmem>>, %arg4: memref<1x128xf32, #tpu.memory_space<vmem>>, %arg5: memref<1x128xf32, #tpu.memory_space<vmem>>, %arg6: memref<1x128xf32, #tpu.memory_space<vmem>>, %arg7: memref<64x128xf32, #tpu.memory_space<vmem>>, %arg8: memref<1xf32, #tpu.memory_space<smem>>, %arg9: memref<1x2x1xf32, #tpu.memory_space<vmem>>) attributes {dimension_semantics = [#tpu.dimension_semantics<parallel>], iteration_bounds = array<i64: 1>, scalar_prefetch = 0 : i64, scratch_operands = 0 : i64, tpu.core_type = #tpu.core_type<tc>, window_params = [{transform_indices = @transform_0, window_bounds = array<i64: 128, 128>}, {pipeline_mode = #tpu.pipeline_mode<synchronous>, transform_indices = @transform_1, window_bounds = array<i64: 128, 128>}, {pipeline_mode = #tpu.pipeline_mode<synchronous>, transform_indices = @transform_2, window_bounds = array<i64: 1, 128>}, {pipeline_mode = #tpu.pipeline_mode<synchronous>, transform_indices = @transform_3, window_bounds = array<i64: 1, 128>}, {pipeline_mode = #tpu.pipeline_mode<synchronous>, transform_indices = @transform_4, window_bounds = array<i64: 1, 128>}, {pipeline_mode = #tpu.pipeline_mode<synchronous>, transform_indices = @transform_5, window_bounds = array<i64: 1, 128>}, {pipeline_mode = #tpu.pipeline_mode<synchronous>, transform_indices = @transform_6, window_bounds = array<i64: 64, 128>}, {transform_indices = @transform_7, window_bounds = array<i64: 1>}, {transform_indices = @transform_8, window_bounds = array<i64: 1, 2, 1>}]} {
    %c0 = arith.constant 0 : index
    %c0_0 = arith.constant 0 : index
    %0 = vector.load %arg1[%c0, %c0_0] : memref<128x128xbf16, #tpu.memory_space<vmem>>, vector<128x128xbf16>
    %c0_1 = arith.constant 0 : index
    %c0_2 = arith.constant 0 : index
    %1 = vector.load %arg2[%c0_1, %c0_2] : memref<128x128xbf16, #tpu.memory_space<vmem>>, vector<128x128xbf16>
    %cst = arith.constant dense<0.000000e+00> : vector<128x128xf32>
    %2 = tpu.matmul %0, %1, %cst {dimension_numbers = #tpu.dot_dimension_numbers<[1], [0], [0], [1], [0, 0, 1, 1], [], []>} : vector<128x128xbf16>, vector<128x128xbf16>, vector<128x128xf32> -> vector<128x128xf32>
    %c0_3 = arith.constant 0 : index
    %c0_4 = arith.constant 0 : index
    %3 = vector.load %arg3[%c0_3, %c0_4] : memref<1x128xf32, #tpu.memory_space<vmem>>, vector<1x128xf32>
    %cst_5 = arith.constant 7.812500e-03 : f32
    %4 = vector.broadcast %cst_5 : f32 to vector<1x128xf32>
    %5 = arith.mulf %3, %4 : vector<1x128xf32>
    %c0_6 = arith.constant 0 : index
    %c0_7 = arith.constant 0 : index
    %6 = vector.load %arg4[%c0_6, %c0_7] : memref<1x128xf32, #tpu.memory_space<vmem>>, vector<1x128xf32>
    %cst_8 = arith.constant 7.812500e-03 : f32
    %7 = vector.broadcast %cst_8 : f32 to vector<1x128xf32>
    %8 = arith.mulf %6, %7 : vector<1x128xf32>
    %9 = arith.mulf %5, %5 : vector<1x128xf32>
    %10 = arith.subf %8, %9 : vector<1x128xf32>
    %c0_9 = arith.constant 0 : index
    %c0_10 = arith.constant 0 : index
    %11 = vector.load %arg5[%c0_9, %c0_10] : memref<1x128xf32, #tpu.memory_space<vmem>>, vector<1x128xf32>
    %cst_11 = arith.constant 9.99999974E-6 : f32
    %12 = vector.broadcast %cst_11 : f32 to vector<1x128xf32>
    %13 = arith.addf %10, %12 : vector<1x128xf32>
    %14 = math.rsqrt %13 : vector<1x128xf32>
    %15 = arith.mulf %11, %14 : vector<1x128xf32>
    %c0_12 = arith.constant 0 : index
    %c0_13 = arith.constant 0 : index
    %16 = vector.load %arg6[%c0_12, %c0_13] : memref<1x128xf32, #tpu.memory_space<vmem>>, vector<1x128xf32>
    %17 = arith.mulf %5, %15 : vector<1x128xf32>
    %18 = arith.subf %16, %17 : vector<1x128xf32>
    %19 = vector.broadcast %15 : vector<1x128xf32> to vector<128x128xf32>
    %20 = arith.mulf %2, %19 : vector<128x128xf32>
    %21 = vector.broadcast %18 : vector<1x128xf32> to vector<128x128xf32>
    %22 = arith.addf %20, %21 : vector<128x128xf32>
    %cst_14 = arith.constant 0.000000e+00 : f32
    %23 = vector.broadcast %cst_14 : f32 to vector<128x128xf32>
    %24 = arith.maximumf %22, %23 : vector<128x128xf32>
    %25 = vector.shape_cast %24 : vector<128x128xf32> to vector<2x64x128xf32>
    %c0_15 = arith.constant 0 : index
    %c0_16 = arith.constant 0 : index
    %26 = vector.load %arg7[%c0_15, %c0_16] : memref<64x128xf32, #tpu.memory_space<vmem>>, vector<64x128xf32>
    %27 = vector.shape_cast %26 : vector<64x128xf32> to vector<1x64x128xf32>
    %28 = vector.broadcast %27 : vector<1x64x128xf32> to vector<2x64x128xf32>
    %29 = arith.mulf %25, %28 : vector<2x64x128xf32>
    %cst_17 = arith.constant dense<0.000000e+00> : vector<2x64xf32>
    %30 = vector.multi_reduction <add>, %29, %cst_17 [2] : vector<2x64x128xf32> to vector<2x64xf32>
    %cst_18 = arith.constant dense<0.000000e+00> : vector<2xf32>
    %31 = vector.multi_reduction <add>, %30, %cst_18 [1] : vector<2x64xf32> to vector<2xf32>
    %32 = vector.shape_cast %31 : vector<2xf32> to vector<2x1xf32>
    %c0_19 = arith.constant 0 : index
    %33 = memref.load %arg8[%c0_19] : memref<1xf32, #tpu.memory_space<smem>>
    %34 = vector.broadcast %33 : f32 to vector<2x1xf32>
    %35 = arith.addf %32, %34 : vector<2x1xf32>
    %36 = vector.shape_cast %35 : vector<2x1xf32> to vector<1x2x1xf32>
    %c0_20 = arith.constant 0 : index
    %c0_21 = arith.constant 0 : index
    %c0_22 = arith.constant 0 : index
    %37 = vector.load %arg9[%c0_20, %c0_21, %c0_22] : memref<1x2x1xf32, #tpu.memory_space<vmem>>, vector<1x2x1xf32>
    tpu.vector_store %arg9[%c0_20, %c0_21, %c0_22], %36 {strides = array<i32>} : memref<1x2x1xf32, #tpu.memory_space<vmem>>, vector<1x2x1xf32>,
    return
  }
  func.func @transform_0(%arg0: i32) -> (i32, i32) {
    %c0_i32 = arith.constant 0 : i32
    %c0_i32_0 = arith.constant 0 : i32
    return %arg0, %c0_i32 : i32, i32
  }
  func.func @transform_1(%arg0: i32) -> (i32, i32) {
    %c0_i32 = arith.constant 0 : i32
    %c0_i32_0 = arith.constant 0 : i32
    %c0_i32_1 = arith.constant 0 : i32
    return %c0_i32, %c0_i32_0 : i32, i32
  }
  func.func @transform_2(%arg0: i32) -> (i32, i32) {
    %c0_i32 = arith.constant 0 : i32
    %c0_i32_0 = arith.constant 0 : i32
    %c0_i32_1 = arith.constant 0 : i32
    return %c0_i32, %c0_i32_0 : i32, i32
  }
  func.func @transform_3(%arg0: i32) -> (i32, i32) {
    %c0_i32 = arith.constant 0 : i32
    %c0_i32_0 = arith.constant 0 : i32
    %c0_i32_1 = arith.constant 0 : i32
    return %c0_i32, %c0_i32_0 : i32, i32
  }
  func.func @transform_4(%arg0: i32) -> (i32, i32) {
    %c0_i32 = arith.constant 0 : i32
    %c0_i32_0 = arith.constant 0 : i32
    %c0_i32_1 = arith.constant 0 : i32
    return %c0_i32, %c0_i32_0 : i32, i32
  }
  func.func @transform_5(%arg0: i32) -> (i32, i32) {
    %c0_i32 = arith.constant 0 : i32
    %c0_i32_0 = arith.constant 0 : i32
    %c0_i32_1 = arith.constant 0 : i32
    return %c0_i32, %c0_i32_0 : i32, i32
  }
  func.func @transform_6(%arg0: i32) -> (i32, i32) {
    %c0_i32 = arith.constant 0 : i32
    %c0_i32_0 = arith.constant 0 : i32
    %c0_i32_1 = arith.constant 0 : i32
    return %c0_i32, %c0_i32_0 : i32, i32
  }
  func.func @transform_7(%arg0: i32) -> i32 {
    %c0_i32 = arith.constant 0 : i32
    %c0_i32_0 = arith.constant 0 : i32
    return %c0_i32 : i32
  }
  func.func @transform_8(%arg0: i32) -> (i32, i32, i32) {
    %c0_i32 = arith.constant 0 : i32
    %c0_i32_0 = arith.constant 0 : i32
    %c0_i32_1 = arith.constant 0 : i32
    return %arg0, %c0_i32, %c0_i32_0 : i32, i32, i32
  }
}

</mosaic_0001>

<llo_original>
// kernel: discriminator_forward.2
$region0: #{discriminator_forward.2}
  #allocation0 [shape = 'u32[]', space=smem, size = 0x4, offset = 0x4, fixed_abs, tag = 'smem constant byte address 0x4 - core index']
  #allocation1 [shape = 'u32[144,128]{1,0:T(1,128)}', space=vmem, size = 0x12000, scoped, tag = 'internal scratch']
  %s0 = inlined_call_operand.vmem [shape: bf16[128,128], index: 0, kind: input, shape index: {}]
  %s1 = inlined_call_operand.vmem [shape: bf16[128,128], index: 1, kind: input, shape index: {}]
  %s2 = inlined_call_operand.vmem [shape: f32[1,8,128], index: 2, kind: output, shape index: {0}]
  %s3 = inlined_call_operand.vmem [shape: f32[1,8,128], index: 3, kind: output, shape index: {1}]
  %4 = xla_tuple %s2, %s3
  %s5 = sld [smem:[#allocation0]]
  $region26: #{discriminator_forward.2} parent=0
    _
  %s7 = ssub.s32 1, %s5
  %s8 = scalar_select 0, %s7, %s5
  // Predicated region
  $region2: #{discriminator_forward.2} parent=0 // pred_check
    _
  $region3: #{discriminator_forward.2} parent=0 // pred_check_branch
    %10 = sbr.rel (0) target = $region5
  $region4: #{discriminator_forward.2} parent=0 // pred_region
    _
  $region5: #{discriminator_forward.2} parent=0 // pred_fallthru
    _
  // Predicated region
  $region6: #{discriminator_forward.2} parent=0 // pred_check
    _
  $region7: #{discriminator_forward.2} parent=0 // pred_check_branch
    %12 = sbr.rel (0) target = $region9
  $region8: #{discriminator_forward.2} parent=0 // pred_region
    _
  $region9: #{discriminator_forward.2} parent=0 // pred_fallthru
    _
  %v14 = vld [vmem:[%s0] sm:$0xf]
  %v15 = vld [vmem:[%s0 + $0x4] sm:$0xf]
  %v16 = vld [vmem:[%s0 + $0x8] sm:$0xf]
  %v17 = vld [vmem:[%s0 + $0xc] sm:$0xf]
  %v18 = vld [vmem:[%s0 + $0x10] sm:$0xf]
  %v19 = vld [vmem:[%s0 + $0x14] sm:$0xf]
  %v20 = vld [vmem:[%s0 + $0x18] sm:$0xf]
  %v21 = vld [vmem:[%s0 + $0x1c] sm:$0xf]
  %v22 = vld [vmem:[%s0 + $0x20] sm:$0xf]
  %v23 = vld [vmem:[%s0 + $0x24] sm:$0xf]
  %v24 = vld [vmem:[%s0 + $0x28] sm:$0xf]
  %v25 = vld [vmem:[%s0 + $0x2c] sm:$0xf]
  %v26 = vld [vmem:[%s0 + $0x30] sm:$0xf]
  %v27 = vld [vmem:[%s0 + $0x34] sm:$0xf]
  %v28 = vld [vmem:[%s0 + $0x38] sm:$0xf]
  %v29 = vld [vmem:[%s0 + $0x3c] sm:$0xf]
  %v30 = vld [vmem:[%s1] sm:$0xf]
  %v31 = vld [vmem:[%s1 + $0x4] sm:$0xf]
  %v32 = vld [vmem:[%s1 + $0x8] sm:$0xf]
  %v33 = vld [vmem:[%s1 + $0xc] sm:$0xf]
  %v34 = vld [vmem:[%s1 + $0x10] sm:$0xf]
  %v35 = vld [vmem:[%s1 + $0x14] sm:$0xf]
  %v36 = vld [vmem:[%s1 + $0x18] sm:$0xf]
  %v37 = vld [vmem:[%s1 + $0x1c] sm:$0xf]
  %v38 = vld [vmem:[%s1 + $0x20] sm:$0xf]
  %v39 = vld [vmem:[%s1 + $0x24] sm:$0xf]
  %v40 = vld [vmem:[%s1 + $0x28] sm:$0xf]
  %v41 = vld [vmem:[%s1 + $0x2c] sm:$0xf]
  %v42 = vld [vmem:[%s1 + $0x30] sm:$0xf]
  %v43 = vld [vmem:[%s1 + $0x34] sm:$0xf]
  %v44 = vld [vmem:[%s1 + $0x38] sm:$0xf]
  %v45 = vld [vmem:[%s1 + $0x3c] sm:$0xf]
  %v62 = vunpack.c.l.b16 %v14
  %v63 = vunpack.c.l.b16 %v15
  %v64 = vunpack.c.l.b16 %v16
  %v65 = vunpack.c.l.b16 %v17
  %v66 = vunpack.c.l.b16 %v18
  %v67 = vunpack.c.l.b16 %v19
  %v68 = vunpack.c.l.b16 %v20
  %v69 = vunpack.c.l.b16 %v21
  %v70 = vunpack.c.l.b16 %v22
  %v71 = vunpack.c.l.b16 %v23
  %v72 = vunpack.c.l.b16 %v24
  %v73 = vunpack.c.l.b16 %v25
  %v74 = vunpack.c.l.b16 %v26
  %v75 = vunpack.c.l.b16 %v27
  %v76 = vunpack.c.l.b16 %v28
  %v77 = vunpack.c.l.b16 %v29
  %v78 = vpack.c.b16 %v63, %v62
  %v79 = vpack.c.b16 %v65, %v64
  %v80 = vpack.c.b16 %v67, %v66
  %v81 = vpack.c.b16 %v69, %v68
  %v82 = vpack.c.b16 %v71, %v70
  %v83 = vpack.c.b16 %v73, %v72
  %v84 = vpack.c.b16 %v75, %v74
  %v85 = vpack.c.b16 %v77, %v76
  %v110 = vunpack.c.l.b16 %v30
  %v111 = vunpack.c.l.b16 %v31
  %v112 = vunpack.c.l.b16 %v32
  %v113 = vunpack.c.l.b16 %v33
  %v114 = vunpack.c.l.b16 %v34
  %v115 = vunpack.c.l.b16 %v35
  %v116 = vunpack.c.l.b16 %v36
  %v117 = vunpack.c.l.b16 %v37
  %v118 = vunpack.c.l.b16 %v38
  %v119 = vunpack.c.l.b16 %v39
  %v120 = vunpack.c.l.b16 %v40
  %v121 = vunpack.c.l.b16 %v41
  %v122 = vunpack.c.l.b16 %v42
  %v123 = vunpack.c.l.b16 %v43
  %v124 = vunpack.c.l.b16 %v44
  %v125 = vunpack.c.l.b16 %v45
  %v126 = vpack.c.b16 %v111, %v110
  %v127 = vpack.c.b16 %v113, %v112
  %v128 = vpack.c.b16 %v115, %v114
  %v129 = vpack.c.b16 %v117, %v116
  %v130 = vpack.c.b16 %v119, %v118
  %v131 = vpack.c.b16 %v121, %v120
  %v132 = vpack.c.b16 %v123, %v122
  %v133 = vpack.c.b16 %v125, %v124
  %142 = vmatprep.subr.bf16.mxu0 0
  %143 = vmatpush1.bf16.msra.mxu0 %v133
  %144 = vmatprep.subr.bf16.mxu0 0
  %145 = vmatpush1.bf16.msra.mxu0 %v132
  %146 = vmatprep.subr.bf16.mxu0 0
  %147 = vmatpush1.bf16.msra.mxu0 %v131
  %148 = vmatprep.subr.bf16.mxu0 0
  %149 = vmatpush1.bf16.msra.mxu0 %v130
  %150 = vmatprep.subr.bf16.mxu0 0
  %151 = vmatpush1.bf16.msra.mxu0 %v129
  %152 = vmatprep.subr.bf16.mxu0 0
  %153 = vmatpush1.bf16.msra.mxu0 %v128
  %154 = vmatprep.subr.bf16.mxu0 0
  %155 = vmatpush1.bf16.msra.mxu0 %v127
  %156 = vmatprep.subr.bf16.mxu0 0
  %157 = vmatpush1.bf16.msra.mxu0 %v126
  %158 = vmatprep.subr.bf16.mxu0 0
  %159 = vmatpush2.bf16.msra.mxu0 0
  %160 = vmatprep.subr.bf16.mxu0 0
  %161 = vmatpush2.bf16.msra.mxu0 0
  %162 = vmatprep.subr.bf16.mxu0 0
  %163 = vmatpush2.bf16.msra.mxu0 0
  %164 = vmatprep.subr.bf16.mxu0 0
  %165 = vmatpush2.bf16.msra.mxu0 0
  %166 = vmatprep.subr.bf16.mxu0 0
  %167 = vmatpush2.bf16.msra.mxu0 0
  %168 = vmatprep.subr.bf16.mxu0 0
  %169 = vmatpush2.bf16.msra.mxu0 0
  %170 = vmatprep.subr.bf16.mxu0 0
  %171 = vmatpush2.bf16.msra.mxu0 0
  %172 = vmatprep.subr.bf16.mxu0 0
  %173 = vmatpush2.bf16.msra.mxu0 0
  %174 = vmatprep.mubr.bf16.mxu0 0
  %175 = vmatmul.mubr.bf16.gmra.mxu0 %v78
  %v176 = vpop.f32.mrf.mxu0
  %v177 = vadd.f32 0.0, %v176
  %v178 = vpop.f32.mrf.mxu0
  %v179 = vpop.f32.mrf.mxu0
  %v180 = vadd.f32 0.0, %v179
  %v181 = vpop.f32.mrf.mxu0
  %182 = vmatprep.mubr.bf16.mxu0 0
  %183 = vmatmul.mubr.bf16.gmra.mxu0 %v79
  %v184 = vpop.f32.mrf.mxu0
  %v185 = vadd.f32 0.0, %v184
  %v186 = vpop.f32.mrf.mxu0
  %v187 = vpop.f32.mrf.mxu0
  %v188 = vadd.f32 0.0, %v187
  %v189 = vpop.f32.mrf.mxu0
  %190 = vmatprep.mubr.bf16.mxu0 0
  %191 = vmatmul.mubr.bf16.gmra.mxu0 %v80
  %v192 = vpop.f32.mrf.mxu0
  %v193 = vadd.f32 0.0, %v192
  %v194 = vpop.f32.mrf.mxu0
  %v195 = vpop.f32.mrf.mxu0
  %v196 = vadd.f32 0.0, %v195
  %v197 = vpop.f32.mrf.mxu0
  %198 = vmatprep.mubr.bf16.mxu0 0
  %199 = vmatmul.mubr.bf16.gmra.mxu0 %v81
  %v200 = vpop.f32.mrf.mxu0
  %v201 = vadd.f32 0.0, %v200
  %v202 = vpop.f32.mrf.mxu0
  %v203 = vpop.f32.mrf.mxu0
  %v204 = vadd.f32 0.0, %v203
  %v205 = vpop.f32.mrf.mxu0
  %206 = vmatprep.mubr.bf16.mxu0 0
  %207 = vmatmul.mubr.bf16.gmra.mxu0 %v82
  %v208 = vpop.f32.mrf.mxu0
  %v209 = vadd.f32 0.0, %v208
  %v210 = vpop.f32.mrf.mxu0
  %v211 = vpop.f32.mrf.mxu0
  %v212 = vadd.f32 0.0, %v211
  %v213 = vpop.f32.mrf.mxu0
  %214 = vmatprep.mubr.bf16.mxu0 0
  %215 = vmatmul.mubr.bf16.gmra.mxu0 %v83
  %v216 = vpop.f32.mrf.mxu0
  %v217 = vadd.f32 0.0, %v216
  %v218 = vpop.f32.mrf.mxu0
  %v219 = vpop.f32.mrf.mxu0
  %v220 = vadd.f32 0.0, %v219
  %v221 = vpop.f32.mrf.mxu0
  %222 = vmatprep.mubr.bf16.mxu0 0
  %223 = vmatmul.mubr.bf16.gmra.mxu0 %v84
  %v224 = vpop.f32.mrf.mxu0
  %v225 = vadd.f32 0.0, %v224
  %v226 = vpop.f32.mrf.mxu0
  %v227 = vpop.f32.mrf.mxu0
  %v228 = vadd.f32 0.0, %v227
  %v229 = vpop.f32.mrf.mxu0
  %230 = vmatprep.mubr.bf16.mxu0 0
  %231 = vmatmul.mubr.bf16.gmra.mxu0 %v85
  %v232 = vpop.f32.mrf.mxu0
  %v233 = vadd.f32 0.0, %v232
  %v234 = vpop.f32.mrf.mxu0
  %v235 = vpop.f32.mrf.mxu0
  %v236 = vadd.f32 0.0, %v235
  %v237 = vpop.f32.mrf.mxu0
  %238 = vdwg.mxu0
  %239 = vmatprep.subr.mxu0 0.0
  %240 = vmatpush1.msra.mxu0 %v236
  %241 = vmatprep.subr.mxu0 0.0
  %242 = vmatpush1.msra.mxu0 %v233
  %243 = vmatprep.subr.mxu0 0.0
  %244 = vmatpush1.msra.mxu0 %v228
  %245 = vmatprep.subr.mxu0 0.0
  %246 = vmatpush1.msra.mxu0 %v225
  %247 = vmatprep.subr.mxu0 0.0
  %248 = vmatpush1.msra.mxu0 %v220
  %249 = vmatprep.subr.mxu0 0.0
  %250 = vmatpush1.msra.mxu0 %v217
  %251 = vmatprep.subr.mxu0 0.0
  %252 = vmatpush1.msra.mxu0 %v212
  %253 = vmatprep.subr.mxu0 0.0
  %254 = vmatpush1.msra.mxu0 %v209
  %255 = vmatprep.subr.mxu0 0.0
  %256 = vmatpush1.msra.mxu0 %v204
  %257 = vmatprep.subr.mxu0 0.0
  %258 = vmatpush1.msra.mxu0 %v201
  %259 = vmatprep.subr.mxu0 0.0
  %260 = vmatpush1.msra.mxu0 %v196
  %261 = vmatprep.subr.mxu0 0.0
  %262 = vmatpush1.msra.mxu0 %v193
  %263 = vmatprep.subr.mxu0 0.0
  %264 = vmatpush1.msra.mxu0 %v188
  %265 = vmatprep.subr.mxu0 0.0
  %266 = vmatpush1.msra.mxu0 %v185
  %267 = vmatprep.subr.mxu0 0.0
  %268 = vmatpush1.msra.mxu0 %v180
  %269 = vmatprep.subr.mxu0 0.0
  %270 = vmatpush1.msra.mxu0 %v177
  %271 = vmatprep.subr.mxu0 0.0
  %272 = vmatpush2.msra.mxu0 0.0
  %273 = vmatprep.subr.mxu0 0.0
  %274 = vmatpush2.msra.mxu0 0.0
  %275 = vmatprep.subr.mxu0 0.0
  %276 = vmatpush2.msra.mxu0 0.0
  %277 = vmatprep.subr.mxu0 0.0
  %278 = vmatpush2.msra.mxu0 0.0
  %279 = vmatprep.subr.mxu0 0.0
  %280 = vmatpush2.msra.mxu0 0.0
  %281 = vmatprep.subr.mxu0 0.0
  %282 = vmatpush2.msra.mxu0 0.0
  %283 = vmatprep.subr.mxu0 0.0
  %284 = vmatpush2.msra.mxu0 0.0
  %285 = vmatprep.subr.mxu0 0.0
  %286 = vmatpush2.msra.mxu0 0.0
  %287 = vmatprep.subr.mxu0 0.0
  %288 = vmatpush2.msra.mxu0 0.0
  %289 = vmatprep.subr.mxu0 0.0
  %290 = vmatpush2.msra.mxu0 0.0
  %291 = vmatprep.subr.mxu0 0.0
  %292 = vmatpush2.msra.mxu0 0.0
  %293 = vmatprep.subr.mxu0 0.0
  %294 = vmatpush2.msra.mxu0 0.0
  %295 = vmatprep.subr.mxu0 0.0
  %296 = vmatpush2.msra.mxu0 0.0
  %297 = vmatprep.subr.mxu0 0.0
  %298 = vmatpush2.msra.mxu0 0.0
  %299 = vmatprep.subr.mxu0 0.0
  %300 = vmatpush2.msra.mxu0 0.0
  %301 = vmatprep.subr.mxu0 0.0
  %302 = vmatpush2.msra.mxu0 0.0
  %303 = vmatprep.mubr.f32.mxu0 0.0
  %304 = vmatmul.mubr.f32.gmra.mxu0 1.0
  %v305 = vpop.f32.mrf.mxu0
  %v306 = vadd.f32 0.0, %v305
  %v307 = vpop.f32.mrf.mxu0
  %308 = vdwg.mxu0
  %309 = vst [vmem:[%s2] sm:$0xff] %v306
  %v310 = vmul.f32 %v177, %v177
  %v311 = vmul.f32 %v180, %v180
  %v312 = vmul.f32 %v185, %v185
  %v313 = vmul.f32 %v188, %v188
  %v314 = vmul.f32 %v193, %v193
  %v315 = vmul.f32 %v196, %v196
  %v316 = vmul.f32 %v201, %v201
  %v317 = vmul.f32 %v204, %v204
  %v318 = vmul.f32 %v209, %v209
  %v319 = vmul.f32 %v212, %v212
  %v320 = vmul.f32 %v217, %v217
  %v321 = vmul.f32 %v220, %v220
  %v322 = vmul.f32 %v225, %v225
  %v323 = vmul.f32 %v228, %v228
  %v324 = vmul.f32 %v233, %v233
  %v325 = vmul.f32 %v236, %v236
  %326 = vmatprep.subr.mxu0 0.0
  %327 = vmatpush1.msra.mxu0 %v325
  %328 = vmatprep.subr.mxu0 0.0
  %329 = vmatpush1.msra.mxu0 %v324
  %330 = vmatprep.subr.mxu0 0.0
  %331 = vmatpush1.msra.mxu0 %v323
  %332 = vmatprep.subr.mxu0 0.0
  %333 = vmatpush1.msra.mxu0 %v322
  %334 = vmatprep.subr.mxu0 0.0
  %335 = vmatpush1.msra.mxu0 %v321
  %336 = vmatprep.subr.mxu0 0.0
  %337 = vmatpush1.msra.mxu0 %v320
  %338 = vmatprep.subr.mxu0 0.0
  %339 = vmatpush1.msra.mxu0 %v319
  %340 = vmatprep.subr.mxu0 0.0
  %341 = vmatpush1.msra.mxu0 %v318
  %342 = vmatprep.subr.mxu0 0.0
  %343 = vmatpush1.msra.mxu0 %v317
  %344 = vmatprep.subr.mxu0 0.0
  %345 = vmatpush1.msra.mxu0 %v316
  %346 = vmatprep.subr.mxu0 0.0
  %347 = vmatpush1.msra.mxu0 %v315
  %348 = vmatprep.subr.mxu0 0.0
  %349 = vmatpush1.msra.mxu0 %v314
  %350 = vmatprep.subr.mxu0 0.0
  %351 = vmatpush1.msra.mxu0 %v313
  %352 = vmatprep.subr.mxu0 0.0
  %353 = vmatpush1.msra.mxu0 %v312
  %354 = vmatprep.subr.mxu0 0.0
  %355 = vmatpush1.msra.mxu0 %v311
  %356 = vmatprep.subr.mxu0 0.0
  %357 = vmatpush1.msra.mxu0 %v310
  %358 = vmatprep.subr.mxu0 0.0
  %359 = vmatpush2.msra.mxu0 0.0
  %360 = vmatprep.subr.mxu0 0.0
  %361 = vmatpush2.msra.mxu0 0.0
  %362 = vmatprep.subr.mxu0 0.0
  %363 = vmatpush2.msra.mxu0 0.0
  %364 = vmatprep.subr.mxu0 0.0
  %365 = vmatpush2.msra.mxu0 0.0
  %366 = vmatprep.subr.mxu0 0.0
  %367 = vmatpush2.msra.mxu0 0.0
  %368 = vmatprep.subr.mxu0 0.0
  %369 = vmatpush2.msra.mxu0 0.0
  %370 = vmatprep.subr.mxu0 0.0
  %371 = vmatpush2.msra.mxu0 0.0
  %372 = vmatprep.subr.mxu0 0.0
  %373 = vmatpush2.msra.mxu0 0.0
  %374 = vmatprep.subr.mxu0 0.0
  %375 = vmatpush2.msra.mxu0 0.0
  %376 = vmatprep.subr.mxu0 0.0
  %377 = vmatpush2.msra.mxu0 0.0
  %378 = vmatprep.subr.mxu0 0.0
  %379 = vmatpush2.msra.mxu0 0.0
  %380 = vmatprep.subr.mxu0 0.0
  %381 = vmatpush2.msra.mxu0 0.0
  %382 = vmatprep.subr.mxu0 0.0
  %383 = vmatpush2.msra.mxu0 0.0
  %384 = vmatprep.subr.mxu0 0.0
  %385 = vmatpush2.msra.mxu0 0.0
  %386 = vmatprep.subr.mxu0 0.0
  %387 = vmatpush2.msra.mxu0 0.0
  %388 = vmatprep.subr.mxu0 0.0
  %389 = vmatpush2.msra.mxu0 0.0
  %390 = vmatprep.mubr.f32.mxu0 0.0
  %391 = vmatmul.mubr.f32.gmra.mxu0 1.0
  %v392 = vpop.f32.mrf.mxu0
  %v393 = vadd.f32 0.0, %v392
  %v394 = vpop.f32.mrf.mxu0
  %395 = vdwg.mxu0
  %396 = vst [vmem:[%s3] sm:$0xff] %v393
  // Predicated region
  $region10: #{discriminator_forward.2} parent=0 // pred_check
    _
  $region11: #{discriminator_forward.2} parent=0 // pred_check_branch
    %398 = sbr.rel (0) target = $region13
  $region12: #{discriminator_forward.2} parent=0 // pred_region
    _
  $region13: #{discriminator_forward.2} parent=0 // pred_fallthru
    _
  // Predicated region
  $region14: #{discriminator_forward.2} parent=0 // pred_check
    _
  $region15: #{discriminator_forward.2} parent=0 // pred_check_branch
    %400 = sbr.rel (0) target = $region17
  $region16: #{discriminator_forward.2} parent=0 // pred_region
    _
  $region17: #{discriminator_forward.2} parent=0 // pred_fallthru
    _
  // Predicated region
  $region18: #{discriminator_forward.2} parent=0 // pred_check
    _
  $region19: #{discriminator_forward.2} parent=0 // pred_check_branch
    %402 = sbr.rel (0) target = $region21
  $region20: #{discriminator_forward.2} parent=0 // pred_region
    _
  $region21: #{discriminator_forward.2} parent=0 // pred_fallthru
    _
  // Predicated region
  $region22: #{discriminator_forward.2} parent=0 // pred_check
    _
  $region23: #{discriminator_forward.2} parent=0 // pred_check_branch
    %404 = sbr.rel (0) target = $region25
  $region24: #{discriminator_forward.2} parent=0 // pred_region
    _
  $region25: #{discriminator_forward.2} parent=0 // pred_fallthru
    _

// kernel: discriminator_forward.3
$region0: #{discriminator_forward.3}
  #allocation0 [shape = 'u32[]', space=smem, size = 0x4, offset = 0x4, fixed_abs, tag = 'smem constant byte address 0x4 - core index']
  #allocation1 [shape = 'u32[144,128]{1,0:T(1,128)}', space=vmem, size = 0x12000, scoped, tag = 'internal scratch']
  #allocation2 [shape = 'f32[1]{0:T(128)S(6)}', space=smem, size = 0x200, scoped, tag = 'scoped memory for discriminator_forward.3']
  %s0 = inlined_call_operand.vmem [shape: bf16[128,128], index: 0, kind: input, shape index: {}]
  %s1 = inlined_call_operand.vmem [shape: bf16[128,128], index: 1, kind: input, shape index: {}]
  %s2 = inlined_call_operand.vmem [shape: f32[1,128], index: 2, kind: input, shape index: {}]
  %s3 = inlined_call_operand.vmem [shape: f32[1,128], index: 3, kind: input, shape index: {}]
  %s4 = inlined_call_operand.vmem [shape: f32[1,128], index: 4, kind: input, shape index: {}]
  %s5 = inlined_call_operand.vmem [shape: f32[1,128], index: 5, kind: input, shape index: {}]
  %s6 = inlined_call_operand.vmem [shape: f32[64,128], index: 6, kind: input, shape index: {}]
  %s7 = inlined_call_operand.<no memory space> [shape: f32[1], index: 7, kind: input, shape index: {}]
  %s8 = inlined_call_operand.vmem [shape: f32[1,2,1], index: 8, kind: output, shape index: {}]
  %s9 = sld [smem:[#allocation0]]
  $region42: #{discriminator_forward.3} parent=0
    _
  %s11 = ssub.s32 1, %s9
  %s12 = scalar_select 0, %s11, %s9
  %13 = sst [smem:[#allocation2]] %s7
  // Predicated region
  $region2: #{discriminator_forward.3} parent=0 // pred_check
    _
  $region3: #{discriminator_forward.3} parent=0 // pred_check_branch
    %15 = sbr.rel (0) target = $region5
  $region4: #{discriminator_forward.3} parent=0 // pred_region
    _
  $region5: #{discriminator_forward.3} parent=0 // pred_fallthru
    _
  // Predicated region
  $region6: #{discriminator_forward.3} parent=0 // pred_check
    _
  $region7: #{discriminator_forward.3} parent=0 // pred_check_branch
    %17 = sbr.rel (0) target = $region9
  $region8: #{discriminator_forward.3} parent=0 // pred_region
    _
  $region9: #{discriminator_forward.3} parent=0 // pred_fallthru
    _
  // Predicated region
  $region10: #{discriminator_forward.3} parent=0 // pred_check
    _
  $region11: #{discriminator_forward.3} parent=0 // pred_check_branch
    %19 = sbr.rel (0) target = $region13
  $region12: #{discriminator_forward.3} parent=0 // pred_region
    _
  $region13: #{discriminator_forward.3} parent=0 // pred_fallthru
    _
  // Predicated region
  $region14: #{discriminator_forward.3} parent=0 // pred_check
    _
  $region15: #{discriminator_forward.3} parent=0 // pred_check_branch
    %21 = sbr.rel (0) target = $region17
  $region16: #{discriminator_forward.3} parent=0 // pred_region
    _
  $region17: #{discriminator_forward.3} parent=0 // pred_fallthru
    _
  // Predicated region
  $region18: #{discriminator_forward.3} parent=0 // pred_check
    _
  $region19: #{discriminator_forward.3} parent=0 // pred_check_branch
    %23 = sbr.rel (0) target = $region21
  $region20: #{discriminator_forward.3} parent=0 // pred_region
    _
  $region21: #{discriminator_forward.3} parent=0 // pred_fallthru
    _
  // Predicated region
  $region22: #{discriminator_forward.3} parent=0 // pred_check
    _
  $region23: #{discriminator_forward.3} parent=0 // pred_check_branch
    %25 = sbr.rel (0) target = $region25
  $region24: #{discriminator_forward.3} parent=0 // pred_region
    _
  $region25: #{discriminator_forward.3} parent=0 // pred_fallthru
    _
  // Predicated region
  $region26: #{discriminator_forward.3} parent=0 // pred_check
    _
  $region27: #{discriminator_forward.3} parent=0 // pred_check_branch
    %27 = sbr.rel (0) target = $region29
  $region28: #{discriminator_forward.3} parent=0 // pred_region
    _
  $region29: #{discriminator_forward.3} parent=0 // pred_fallthru
    _
  // Predicated region
  $region30: #{discriminator_forward.3} parent=0 // pred_check
    _
  $region31: #{discriminator_forward.3} parent=0 // pred_check_branch
    %29 = sbr.rel (0) target = $region33
  $region32: #{discriminator_forward.3} parent=0 // pred_region
    _
  $region33: #{discriminator_forward.3} parent=0 // pred_fallthru
    _
  %v31 = vld [vmem:[%s0] sm:$0xf]
  %v32 = vld [vmem:[%s0 + $0x4] sm:$0xf]
  %v33 = vld [vmem:[%s0 + $0x8] sm:$0xf]
  %v34 = vld [vmem:[%s0 + $0xc] sm:$0xf]
  %v35 = vld [vmem:[%s0 + $0x10] sm:$0xf]
  %v36 = vld [vmem:[%s0 + $0x14] sm:$0xf]
  %v37 = vld [vmem:[%s0 + $0x18] sm:$0xf]
  %v38 = vld [vmem:[%s0 + $0x1c] sm:$0xf]
  %v39 = vld [vmem:[%s0 + $0x20] sm:$0xf]
  %v40 = vld [vmem:[%s0 + $0x24] sm:$0xf]
  %v41 = vld [vmem:[%s0 + $0x28] sm:$0xf]
  %v42 = vld [vmem:[%s0 + $0x2c] sm:$0xf]
  %v43 = vld [vmem:[%s0 + $0x30] sm:$0xf]
  %v44 = vld [vmem:[%s0 + $0x34] sm:$0xf]
  %v45 = vld [vmem:[%s0 + $0x38] sm:$0xf]
  %v46 = vld [vmem:[%s0 + $0x3c] sm:$0xf]
  %v47 = vld [vmem:[%s1] sm:$0xf]
  %v48 = vld [vmem:[%s1 + $0x4] sm:$0xf]
  %v49 = vld [vmem:[%s1 + $0x8] sm:$0xf]
  %v50 = vld [vmem:[%s1 + $0xc] sm:$0xf]
  %v51 = vld [vmem:[%s1 + $0x10] sm:$0xf]
  %v52 = vld [vmem:[%s1 + $0x14] sm:$0xf]
  %v53 = vld [vmem:[%s1 + $0x18] sm:$0xf]
  %v54 = vld [vmem:[%s1 + $0x1c] sm:$0xf]
  %v55 = vld [vmem:[%s1 + $0x20] sm:$0xf]
  %v56 = vld [vmem:[%s1 + $0x24] sm:$0xf]
  %v57 = vld [vmem:[%s1 + $0x28] sm:$0xf]
  %v58 = vld [vmem:[%s1 + $0x2c] sm:$0xf]
  %v59 = vld [vmem:[%s1 + $0x30] sm:$0xf]
  %v60 = vld [vmem:[%s1 + $0x34] sm:$0xf]
  %v61 = vld [vmem:[%s1 + $0x38] sm:$0xf]
  %v62 = vld [vmem:[%s1 + $0x3c] sm:$0xf]
  %v79 = vunpack.c.l.b16 %v31
  %v80 = vunpack.c.l.b16 %v32
  %v81 = vunpack.c.l.b16 %v33
  %v82 = vunpack.c.l.b16 %v34
  %v83 = vunpack.c.l.b16 %v35
  %v84 = vunpack.c.l.b16 %v36
  %v85 = vunpack.c.l.b16 %v37
  %v86 = vunpack.c.l.b16 %v38
  %v87 = vunpack.c.l.b16 %v39
  %v88 = vunpack.c.l.b16 %v40
  %v89 = vunpack.c.l.b16 %v41
  %v90 = vunpack.c.l.b16 %v42
  %v91 = vunpack.c.l.b16 %v43
  %v92 = vunpack.c.l.b16 %v44
  %v93 = vunpack.c.l.b16 %v45
  %v94 = vunpack.c.l.b16 %v46
  %v95 = vpack.c.b16 %v80, %v79
  %v96 = vpack.c.b16 %v82, %v81
  %v97 = vpack.c.b16 %v84, %v83
  %v98 = vpack.c.b16 %v86, %v85
  %v99 = vpack.c.b16 %v88, %v87
  %v100 = vpack.c.b16 %v90, %v89
  %v101 = vpack.c.b16 %v92, %v91
  %v102 = vpack.c.b16 %v94, %v93
  %v127 = vunpack.c.l.b16 %v47
  %v128 = vunpack.c.l.b16 %v48
  %v129 = vunpack.c.l.b16 %v49
  %v130 = vunpack.c.l.b16 %v50
  %v131 = vunpack.c.l.b16 %v51
  %v132 = vunpack.c.l.b16 %v52
  %v133 = vunpack.c.l.b16 %v53
  %v134 = vunpack.c.l.b16 %v54
  %v135 = vunpack.c.l.b16 %v55
  %v136 = vunpack.c.l.b16 %v56
  %v137 = vunpack.c.l.b16 %v57
  %v138 = vunpack.c.l.b16 %v58
  %v139 = vunpack.c.l.b16 %v59
  %v140 = vunpack.c.l.b16 %v60
  %v141 = vunpack.c.l.b16 %v61
  %v142 = vunpack.c.l.b16 %v62
  %v143 = vpack.c.b16 %v128, %v127
  %v144 = vpack.c.b16 %v130, %v129
  %v145 = vpack.c.b16 %v132, %v131
  %v146 = vpack.c.b16 %v134, %v133
  %v147 = vpack.c.b16 %v136, %v135
  %v148 = vpack.c.b16 %v138, %v137
  %v149 = vpack.c.b16 %v140, %v139
  %v150 = vpack.c.b16 %v142, %v141
  %159 = vmatprep.subr.bf16.mxu0 0
  %160 = vmatpush1.bf16.msra.mxu0 %v150
  %161 = vmatprep.subr.bf16.mxu0 0
  %162 = vmatpush1.bf16.msra.mxu0 %v149
  %163 = vmatprep.subr.bf16.mxu0 0
  %164 = vmatpush1.bf16.msra.mxu0 %v148
  %165 = vmatprep.subr.bf16.mxu0 0
  %166 = vmatpush1.bf16.msra.mxu0 %v147
  %167 = vmatprep.subr.bf16.mxu0 0
  %168 = vmatpush1.bf16.msra.mxu0 %v146
  %169 = vmatprep.subr.bf16.mxu0 0
  %170 = vmatpush1.bf16.msra.mxu0 %v145
  %171 = vmatprep.subr.bf16.mxu0 0
  %172 = vmatpush1.bf16.msra.mxu0 %v144
  %173 = vmatprep.subr.bf16.mxu0 0
  %174 = vmatpush1.bf16.msra.mxu0 %v143
  %175 = vmatprep.subr.bf16.mxu0 0
  %176 = vmatpush2.bf16.msra.mxu0 0
  %177 = vmatprep.subr.bf16.mxu0 0
  %178 = vmatpush2.bf16.msra.mxu0 0
  %179 = vmatprep.subr.bf16.mxu0 0
  %180 = vmatpush2.bf16.msra.mxu0 0
  %181 = vmatprep.subr.bf16.mxu0 0
  %182 = vmatpush2.bf16.msra.mxu0 0
  %183 = vmatprep.subr.bf16.mxu0 0
  %184 = vmatpush2.bf16.msra.mxu0 0
  %185 = vmatprep.subr.bf16.mxu0 0
  %186 = vmatpush2.bf16.msra.mxu0 0
  %187 = vmatprep.subr.bf16.mxu0 0
  %188 = vmatpush2.bf16.msra.mxu0 0
  %189 = vmatprep.subr.bf16.mxu0 0
  %190 = vmatpush2.bf16.msra.mxu0 0
  %191 = vmatprep.mubr.bf16.mxu0 0
  %192 = vmatmul.mubr.bf16.gmra.mxu0 %v95
  %v193 = vpop.f32.mrf.mxu0
  %v194 = vadd.f32 0.0, %v193
  %v195 = vpop.f32.mrf.mxu0
  %v196 = vpop.f32.mrf.mxu0
  %v197 = vadd.f32 0.0, %v196
  %v198 = vpop.f32.mrf.mxu0
  %199 = vmatprep.mubr.bf16.mxu0 0
  %200 = vmatmul.mubr.bf16.gmra.mxu0 %v96
  %v201 = vpop.f32.mrf.mxu0
  %v202 = vadd.f32 0.0, %v201
  %v203 = vpop.f32.mrf.mxu0
  %v204 = vpop.f32.mrf.mxu0
  %v205 = vadd.f32 0.0, %v204
  %v206 = vpop.f32.mrf.mxu0
  %207 = vmatprep.mubr.bf16.mxu0 0
  %208 = vmatmul.mubr.bf16.gmra.mxu0 %v97
  %v209 = vpop.f32.mrf.mxu0
  %v210 = vadd.f32 0.0, %v209
  %v211 = vpop.f32.mrf.mxu0
  %v212 = vpop.f32.mrf.mxu0
  %v213 = vadd.f32 0.0, %v212
  %v214 = vpop.f32.mrf.mxu0
  %215 = vmatprep.mubr.bf16.mxu0 0
  %216 = vmatmul.mubr.bf16.gmra.mxu0 %v98
  %v217 = vpop.f32.mrf.mxu0
  %v218 = vadd.f32 0.0, %v217
  %v219 = vpop.f32.mrf.mxu0
  %v220 = vpop.f32.mrf.mxu0
  %v221 = vadd.f32 0.0, %v220
  %v222 = vpop.f32.mrf.mxu0
  %223 = vmatprep.mubr.bf16.mxu0 0
  %224 = vmatmul.mubr.bf16.gmra.mxu0 %v99
  %v225 = vpop.f32.mrf.mxu0
  %v226 = vadd.f32 0.0, %v225
  %v227 = vpop.f32.mrf.mxu0
  %v228 = vpop.f32.mrf.mxu0
  %v229 = vadd.f32 0.0, %v228
  %v230 = vpop.f32.mrf.mxu0
  %231 = vmatprep.mubr.bf16.mxu0 0
  %232 = vmatmul.mubr.bf16.gmra.mxu0 %v100
  %v233 = vpop.f32.mrf.mxu0
  %v234 = vadd.f32 0.0, %v233
  %v235 = vpop.f32.mrf.mxu0
  %v236 = vpop.f32.mrf.mxu0
  %v237 = vadd.f32 0.0, %v236
  %v238 = vpop.f32.mrf.mxu0
  %239 = vmatprep.mubr.bf16.mxu0 0
  %240 = vmatmul.mubr.bf16.gmra.mxu0 %v101
  %v241 = vpop.f32.mrf.mxu0
  %v242 = vadd.f32 0.0, %v241
  %v243 = vpop.f32.mrf.mxu0
  %v244 = vpop.f32.mrf.mxu0
  %v245 = vadd.f32 0.0, %v244
  %v246 = vpop.f32.mrf.mxu0
  %247 = vmatprep.mubr.bf16.mxu0 0
  %248 = vmatmul.mubr.bf16.gmra.mxu0 %v102
  %v249 = vpop.f32.mrf.mxu0
  %v250 = vadd.f32 0.0, %v249
  %v251 = vpop.f32.mrf.mxu0
  %v252 = vpop.f32.mrf.mxu0
  %v253 = vadd.f32 0.0, %v252
  %v254 = vpop.f32.mrf.mxu0
  %255 = vdwg.mxu0
  %v256 = vld [vmem:[%s2] sm:$0x1]
  %v257 = vmul.f32 %v256, 0.0078125
  %v258 = vld [vmem:[%s3] sm:$0x1]
  %v259 = vmul.f32 %v258, 0.0078125
  %v260 = vmul.f32 %v257, %v257
  %v261 = vsub.f32 %v259, %v260
  %v262 = vld [vmem:[%s4] sm:$0x1]
  %v263 = vadd.f32 %v261, 1e-05
  %v264 = vrsqrt.pop %v263
  %v265 = vmul.f32 %v262, %v264
  %v266 = vld [vmem:[%s5] sm:$0x1]
  %v267 = vmul.f32 %v257, %v265
  %v268 = vsub.f32 %v266, %v267
  %v270 = vlaneseq
  %v271 = vshrl.u32 %v270, 7
  %v272 = vsub.s32 0, %v271
  %v273 = vrot.slane %v265, %v272
  %v275 = vmul.f32 %v194, %v273
  %v276 = vmul.f32 %v197, %v273
  %v277 = vmul.f32 %v202, %v273
  %v278 = vmul.f32 %v205, %v273
  %v279 = vmul.f32 %v210, %v273
  %v280 = vmul.f32 %v213, %v273
  %v281 = vmul.f32 %v218, %v273
  %v282 = vmul.f32 %v221, %v273
  %v283 = vmul.f32 %v226, %v273
  %v284 = vmul.f32 %v229, %v273
  %v285 = vmul.f32 %v234, %v273
  %v286 = vmul.f32 %v237, %v273
  %v287 = vmul.f32 %v242, %v273
  %v288 = vmul.f32 %v245, %v273
  %v289 = vmul.f32 %v250, %v273
  %v290 = vmul.f32 %v253, %v273
  %v292 = vlaneseq
  %v293 = vshrl.u32 %v292, 7
  %v294 = vsub.s32 0, %v293
  %v295 = vrot.slane %v268, %v294
  %v297 = vadd.f32 %v275, %v295
  %v298 = vadd.f32 %v276, %v295
  %v299 = vadd.f32 %v277, %v295
  %v300 = vadd.f32 %v278, %v295
  %v301 = vadd.f32 %v279, %v295
  %v302 = vadd.f32 %v280, %v295
  %v303 = vadd.f32 %v281, %v295
  %v304 = vadd.f32 %v282, %v295
  %v305 = vadd.f32 %v283, %v295
  %v306 = vadd.f32 %v284, %v295
  %v307 = vadd.f32 %v285, %v295
  %v308 = vadd.f32 %v286, %v295
  %v309 = vadd.f32 %v287, %v295
  %v310 = vadd.f32 %v288, %v295
  %v311 = vadd.f32 %v289, %v295
  %v312 = vadd.f32 %v290, %v295
  %v313 = vmax.f32 %v297, 0.0
  %v314 = vmax.f32 %v298, 0.0
  %v315 = vmax.f32 %v299, 0.0
  %v316 = vmax.f32 %v300, 0.0
  %v317 = vmax.f32 %v301, 0.0
  %v318 = vmax.f32 %v302, 0.0
  %v319 = vmax.f32 %v303, 0.0
  %v320 = vmax.f32 %v304, 0.0
  %v321 = vmax.f32 %v305, 0.0
  %v322 = vmax.f32 %v306, 0.0
  %v323 = vmax.f32 %v307, 0.0
  %v324 = vmax.f32 %v308, 0.0
  %v325 = vmax.f32 %v309, 0.0
  %v326 = vmax.f32 %v310, 0.0
  %v327 = vmax.f32 %v311, 0.0
  %v328 = vmax.f32 %v312, 0.0
  %v329 = vld [vmem:[%s6] sm:$0xff]
  %v330 = vld [vmem:[%s6 + $0x8] sm:$0xff]
  %v331 = vld [vmem:[%s6 + $0x10] sm:$0xff]
  %v332 = vld [vmem:[%s6 + $0x18] sm:$0xff]
  %v333 = vld [vmem:[%s6 + $0x20] sm:$0xff]
  %v334 = vld [vmem:[%s6 + $0x28] sm:$0xff]
  %v335 = vld [vmem:[%s6 + $0x30] sm:$0xff]
  %v336 = vld [vmem:[%s6 + $0x38] sm:$0xff]
  %v337 = vmul.f32 %v313, %v329
  %v338 = vmul.f32 %v314, %v330
  %v339 = vmul.f32 %v315, %v331
  %v340 = vmul.f32 %v316, %v332
  %v341 = vmul.f32 %v317, %v333
  %v342 = vmul.f32 %v318, %v334
  %v343 = vmul.f32 %v319, %v335
  %v344 = vmul.f32 %v320, %v336
  %v345 = vmul.f32 %v321, %v329
  %v346 = vmul.f32 %v322, %v330
  %v347 = vmul.f32 %v323, %v331
  %v348 = vmul.f32 %v324, %v332
  %v349 = vmul.f32 %v325, %v333
  %v350 = vmul.f32 %v326, %v334
  %v351 = vmul.f32 %v327, %v335
  %v352 = vmul.f32 %v328, %v336
  %353 = vadd.xlane.f32.xlu0 %v337
  %v354 = vpop.xlane.xlu0 %353
  %355 = vadd.xlane.f32.xlu0 %v338
  %v356 = vpop.xlane.xlu0 %355
  %357 = vadd.xlane.f32.xlu0 %v339
  %v358 = vpop.xlane.xlu0 %357
  %359 = vadd.xlane.f32.xlu0 %v340
  %v360 = vpop.xlane.xlu0 %359
  %361 = vadd.xlane.f32.xlu0 %v341
  %v362 = vpop.xlane.xlu0 %361
  %363 = vadd.xlane.f32.xlu0 %v342
  %v364 = vpop.xlane.xlu0 %363
  %365 = vadd.xlane.f32.xlu0 %v343
  %v366 = vpop.xlane.xlu0 %365
  %367 = vadd.xlane.f32.xlu0 %v344
  %v368 = vpop.xlane.xlu0 %367
  %369 = vadd.xlane.f32.xlu0 %v345
  %v370 = vpop.xlane.xlu0 %369
  %371 = vadd.xlane.f32.xlu0 %v346
  %v372 = vpop.xlane.xlu0 %371
  %373 = vadd.xlane.f32.xlu0 %v347
  %v374 = vpop.xlane.xlu0 %373
  %375 = vadd.xlane.f32.xlu0 %v348
  %v376 = vpop.xlane.xlu0 %375
  %377 = vadd.xlane.f32.xlu0 %v349
  %v378 = vpop.xlane.xlu0 %377
  %379 = vadd.xlane.f32.xlu0 %v350
  %v380 = vpop.xlane.xlu0 %379
  %381 = vadd.xlane.f32.xlu0 %v351
  %v382 = vpop.xlane.xlu0 %381
  %383 = vadd.xlane.f32.xlu0 %v352
  %v384 = vpop.xlane.xlu0 %383
  %v401 = vlaneseq
  %v402 = vand.u32 %v401, 127
  %v403 = vlaneseq
  %v404 = vshrl.u32 %v403, 7
  %v405 = vsub.s32 %v402, %v404
  %v406 = vrot.slane %v354, %v405
  %v407 = vadd.s32 %v402, 4294967288
  %v408 = vlaneseq
  %v409 = vshrl.u32 %v408, 7
  %v410 = vsub.s32 %v407, %v409
  %v411 = vrot.slane %v356, %v410
  %vm412 = vcmask 130112
  %v413 = vsel %vm412, %v411, %v406
  %v414 = vadd.s32 %v402, 4294967280
  %v415 = vlaneseq
  %v416 = vshrl.u32 %v415, 7
  %v417 = vsub.s32 %v414, %v416
  %v418 = vrot.slane %v358, %v417
  %vm419 = vcmask 195712
  %v420 = vsel %vm419, %v418, %v413
  %v421 = vadd.s32 %v402, 4294967272
  %v422 = vlaneseq
  %v423 = vshrl.u32 %v422, 7
  %v424 = vsub.s32 %v421, %v423
  %v425 = vrot.slane %v360, %v424
  %vm426 = vcmask 261312
  %v427 = vsel %vm426, %v425, %v420
  %v428 = vadd.s32 %v402, 4294967264
  %v429 = vlaneseq
  %v430 = vshrl.u32 %v429, 7
  %v431 = vsub.s32 %v428, %v430
  %v432 = vrot.slane %v362, %v431
  %vm433 = vcmask 326912
  %v434 = vsel %vm433, %v432, %v427
  %v435 = vadd.s32 %v402, 4294967256
  %v436 = vlaneseq
  %v437 = vshrl.u32 %v436, 7
  %v438 = vsub.s32 %v435, %v437
  %v439 = vrot.slane %v364, %v438
  %vm440 = vcmask 392512
  %v441 = vsel %vm440, %v439, %v434
  %v442 = vadd.s32 %v402, 4294967248
  %v443 = vlaneseq
  %v444 = vshrl.u32 %v443, 7
  %v445 = vsub.s32 %v442, %v444
  %v446 = vrot.slane %v366, %v445
  %vm447 = vcmask 458112
  %v448 = vsel %vm447, %v446, %v441
  %v449 = vadd.s32 %v402, 4294967240
  %v450 = vlaneseq
  %v451 = vshrl.u32 %v450, 7
  %v452 = vsub.s32 %v449, %v451
  %v453 = vrot.slane %v368, %v452
  %vm454 = vcmask 523712
  %v455 = vsel %vm454, %v453, %v448
  %v456 = vlaneseq
  %v457 = vshrl.u32 %v456, 7
  %v458 = vsub.s32 %v402, %v457
  %v459 = vrot.slane %v370, %v458
  %v460 = vlaneseq
  %v461 = vshrl.u32 %v460, 7
  %v462 = vsub.s32 %v407, %v461
  %v463 = vrot.slane %v372, %v462
  %v464 = vsel %vm412, %v463, %v459
  %v465 = vlaneseq
  %v466 = vshrl.u32 %v465, 7
  %v467 = vsub.s32 %v414, %v466
  %v468 = vrot.slane %v374, %v467
  %v469 = vsel %vm419, %v468, %v464
  %v470 = vlaneseq
  %v471 = vshrl.u32 %v470, 7
  %v472 = vsub.s32 %v421, %v471
  %v473 = vrot.slane %v376, %v472
  %v474 = vsel %vm426, %v473, %v469
  %v475 = vlaneseq
  %v476 = vshrl.u32 %v475, 7
  %v477 = vsub.s32 %v428, %v476
  %v478 = vrot.slane %v378, %v477
  %v479 = vsel %vm433, %v478, %v474
  %v480 = vlaneseq
  %v481 = vshrl.u32 %v480, 7
  %v482 = vsub.s32 %v435, %v481
  %v483 = vrot.slane %v380, %v482
  %v484 = vsel %vm440, %v483, %v479
  %v485 = vlaneseq
  %v486 = vshrl.u32 %v485, 7
  %v487 = vsub.s32 %v442, %v486
  %v488 = vrot.slane %v382, %v487
  %v489 = vsel %vm447, %v488, %v484
  %v490 = vlaneseq
  %v491 = vshrl.u32 %v490, 7
  %v492 = vsub.s32 %v449, %v491
  %v493 = vrot.slane %v384, %v492
  %v494 = vsel %vm454, %v493, %v489
  %vm495 = vcmask 1041409
  %v496 = vsel %vm495, %v494, %v455
  %vm498 = vcmask 517120
  %v499 = vsel %vm498, %v496, 0.0
  %500 = vadd.xlane.f32.xlu0 %v499
  %v501 = vpop.xlane.xlu0 %500
  %s502 = sld [smem:[#allocation2]]
  %v503 = vstv %s502
  %v504 = vadd.f32 %v501, %v503
  %vm505 = vcmask 1024
  %506 = vst.msk [vmem:[%s8] sm:$0x3] %vm505, %v504
  // Predicated region
  $region34: #{discriminator_forward.3} parent=0 // pred_check
    _
  $region35: #{discriminator_forward.3} parent=0 // pred_check_branch
    %508 = sbr.rel (0) target = $region37
  $region36: #{discriminator_forward.3} parent=0 // pred_region
    _
  $region37: #{discriminator_forward.3} parent=0 // pred_fallthru
    _
  // Predicated region
  $region38: #{discriminator_forward.3} parent=0 // pred_check
    _
  $region39: #{discriminator_forward.3} parent=0 // pred_check_branch
    %510 = sbr.rel (0) target = $region41
  $region40: #{discriminator_forward.3} parent=0 // pred_region
    _
  $region41: #{discriminator_forward.3} parent=0 // pred_fallthru
    _

</llo_original>
